<compile_context>
chip_gen: v6e
topology: v6e:2x2x1
jax: 0.10.0
libtpu: 0.0.40
codegen_flags: <defaults>
</compile_context>

<pallas_src>
import functools

import jax
import jax.numpy as jnp
import numpy as np
from jax.experimental import pallas as pl
from jax.experimental.pallas import tpu as pltpu


# ------------------------------------------------------------------ helpers --

def _vmem_budget_bytes():
    """~80% of this generation's VMEM (=> ~51 MiB on v7x, ~102 MiB on v5e/v6e)."""
    try:
        cap = pltpu.get_tpu_info().vmem_capacity_bytes
    except Exception:  # conservative fallback (safe on every generation)
        cap = 64 * 1024 * 1024
    return int(0.8 * cap)


def _largest_aligned_divisor(n, cap, prefer=128, fallback=8):
    """Largest t <= cap with n % t == 0, preferring multiples of 128 (fills the
    MXU M dim on v5e), falling back to multiples of 8 (sublane)."""
    cap = int(max(min(cap, n), fallback))
    for align in (prefer, fallback):
        t = (cap // align) * align
        while t >= align:
            if n % t == 0:
                return t
            t -= align
    return n


def _pick_rows_tile(n, per_row_bytes, fixed_bytes, budget):
    """Biggest row tile fitting the VMEM budget, capped so the grid has >= 2
    steps (keeps both v7x TensorCores busy under 'parallel')."""
    rows = max((budget - fixed_bytes) // max(per_row_bytes, 1), 8)
    cap = min(rows, n // 2) if n >= 16 else n
    return _largest_aligned_divisor(n, cap)


# ------------------------------------------------------------------ kernels --

def _proj_kernel(h_ref, w_ref, al_ref, ar_ref, z_ref, el_ref, er_ref, *,
                 compute_dtype):
    """Row tile: z = h@W (all heads, flattened), el = h@(W@attn_l), er = h@(W@attn_r)."""
    cd = compute_dtype
    hx = h_ref[...].astype(cd)
    z_ref[...] = jnp.dot(hx, w_ref[...].astype(cd),
                         preferred_element_type=jnp.float32).astype(z_ref.dtype)
    el_ref[...] = jnp.dot(hx, al_ref[...].astype(cd),
                          preferred_element_type=jnp.float32)
    er_ref[...] = jnp.dot(hx, ar_ref[...].astype(cd),
                          preferred_element_type=jnp.float32)


def _agg_kernel(z_ref, elT_ref, er_ref, out_ref, stats_ref, *,
                num_heads, out_dim, compute_dtype):
    """Dense-graph GAT softmax + aggregation for one tile of T destination
    nodes.  Also emits this tile's (sum, sum of squares) for BatchNorm.

    z_ref     : [N, H*D]   projected features of ALL source nodes (Buffered(1))
    elT_ref   : [H, N]     source attention term, src on lanes   (Buffered(1))
    er_ref    : [T, H]     destination attention term, this tile
    out_ref   : [T, H*D]   aggregated multi-head output (lane-dense)
    stats_ref : [1, 2, HD] partial BN statistics of this tile
    """
    H, D = num_heads, out_dim
    cd = compute_dtype
    z = z_ref[...]                              # [N, H*D]  compute_dtype
    elT = elT_ref[...]                          # [H, N]    f32
    er = er_ref[...]                            # [T, H]    f32
    for h in range(H):                          # static unroll over heads
        logit = er[:, h:h + 1] + elT[h:h + 1, :]            # [T, N]
        logit = jnp.maximum(logit, 0.2 * logit)             # leaky_relu(0.2), 2 VPU ops
        p = jnp.exp(logit - jnp.max(logit, axis=1, keepdims=True))
        # Normalize AFTER the matmul: (p @ z_h) * (1/sum p) touches only [T, D]
        # elements instead of [T, N] (this kernel is EUP/VPU-bound at D=32).
        pz = jnp.dot(p.astype(cd), z[:, h * D:(h + 1) * D],
                     preferred_element_type=jnp.float32)    # [T, D]
        l = jnp.sum(p, axis=1, keepdims=True)               # [T, 1]
        inv = pl.reciprocal(l, approx=True)                 # EUP slot
        inv = inv * (2.0 - l * inv)          # one Newton step -> ~exact, O(T) VPU cost
        out_ref[:, h * D:(h + 1) * D] = pz * inv            # write head slice in place
    tile = out_ref[...]                                     # [T, H*D] f32
    stats_ref[0, 0:1, :] = jnp.sum(tile, axis=0, keepdims=True)
    stats_ref[0, 1:2, :] = jnp.sum(tile * tile, axis=0, keepdims=True)


def _bn_elu_kernel(x_ref, scale_ref, shift_ref, o_ref):
    y = x_ref[...] * scale_ref[...] + shift_ref[...]
    o_ref[...] = jnp.where(y > 0, y, jnp.expm1(jnp.minimum(y, 0.0)))     # ELU(1)


def _bn_elu_res_kernel(x_ref, res_ref, scale_ref, shift_ref, o_ref):
    y = x_ref[...] * scale_ref[...] + shift_ref[...]
    o_ref[...] = res_ref[...] + jnp.where(y > 0, y, jnp.expm1(jnp.minimum(y, 0.0)))


# ----------------------------------------------------------------- wrapper ---

def gat_layer_forward(h, w_t, attn_l, attn_r, gamma, beta, *,
                      num_heads, out_dim, residual=False,
                      compute_dtype=jnp.bfloat16, vmem_budget_bytes=None):
    n, in_dim = h.shape
    H, D = num_heads, out_dim
    HD = H * D
    assert w_t.shape == (in_dim, HD)
    # NOTE: if the node count must be padded to a multiple of 8, the padded
    # (dummy) rows have to be masked out of the softmax (logit = -inf); a dense
    # complete-graph softmax otherwise gives them real attention weight.
    assert n % 8 == 0, "node count must be a multiple of 8 (pad + mask sources)"

    budget = vmem_budget_bytes if vmem_budget_bytes is not None else _vmem_budget_bytes()
    cparams = lambda: pltpu.CompilerParams(dimension_semantics=("parallel",),
                                           vmem_limit_bytes=budget)
    cd_bytes = jnp.dtype(compute_dtype).itemsize
    f32 = jnp.float32
    const2 = lambda i: (0, 0)
    inv1 = pl.Buffered(1)            # grid-invariant inputs: single-buffer them

    # Fold the per-head attention vectors into the fc weight: the logits then
    # come from two tiny extra matmuls instead of a 3D reshape + per-head reduce.
    w3 = w_t.astype(f32).reshape(in_dim, H, D)
    al_fold = jnp.einsum('khd,hd->kh', w3, attn_l).astype(f32)   # [in_dim, H]
    ar_fold = jnp.einsum('khd,hd->kh', w3, attn_r).astype(f32)   # [in_dim, H]

    # ---- pass 1: projection (computed ONCE, not per destination tile) -------
    proj_per_row = 2 * in_dim * 4 + 2 * HD * cd_bytes + 4 * 128 * 4
    proj_fixed = in_dim * HD * 4 + 2 * in_dim * 128 * 4
    Tp = _pick_rows_tile(n, proj_per_row, proj_fixed, budget)
    z, el, er = pl.pallas_call(
        functools.partial(_proj_kernel, compute_dtype=compute_dtype),
        grid=(n // Tp,),
        in_specs=[pl.BlockSpec((Tp, in_dim), lambda i: (i, 0)),
                  pl.BlockSpec((in_dim, HD), const2, pipeline_mode=inv1),
                  pl.BlockSpec((in_dim, H), const2, pipeline_mode=inv1),
                  pl.BlockSpec((in_dim, H), const2, pipeline_mode=inv1)],
        out_specs=(pl.BlockSpec((Tp, HD), lambda i: (i, 0)),
                   pl.BlockSpec((Tp, H), lambda i: (i, 0)),
                   pl.BlockSpec((Tp, H), lambda i: (i, 0))),
        out_shape=(jax.ShapeDtypeStruct((n, HD), compute_dtype),
                   jax.ShapeDtypeStruct((n, H), f32),
                   jax.ShapeDtypeStruct((n, H), f32)),
        compiler_params=cparams(),
    )(h.astype(f32), w_t.astype(f32), al_fold, ar_fold)

    elT = el.T            # [H, n] tiny transpose: puts sources on the lane axis

    # ---- pass 2: attention softmax + aggregation over source nodes ----------
    agg_fixed = n * HD * cd_bytes + 8 * n * 4             # z + elT (Buffered(1))
    agg_per_row = 2 * 128 * 4 + 2 * HD * 4 + 12 * n       # er/out tiles + [T,N] temps
    T = _pick_rows_tile(n, agg_per_row, agg_fixed, budget)
    G = n // T
    h_agg, stats = pl.pallas_call(
        functools.partial(_agg_kernel, num_heads=H, out_dim=D,
                          compute_dtype=compute_dtype),
        grid=(G,),
        in_specs=[pl.BlockSpec((n, HD), const2, pipeline_mode=inv1),
                  pl.BlockSpec((H, n), const2, pipeline_mode=inv1),
                  pl.BlockSpec((T, H), lambda i: (i, 0))],
        out_specs=(pl.BlockSpec((T, HD), lambda i: (i, 0)),
                   pl.BlockSpec((1, 2, HD), lambda i: (i, 0, 0))),
        out_shape=(jax.ShapeDtypeStruct((n, HD), f32),
                   jax.ShapeDtypeStruct((G, 2, HD), f32)),
        compiler_params=cparams(),
    )(z, elT, er)

    # ---- BatchNorm1d statistics (training-mode batch stats, biased var) -----
    tot = jnp.sum(stats, axis=0)                          # [2, HD], tiny reduce
    mean = tot[0] / n
    var = jnp.maximum(tot[1] / n - mean * mean, 0.0)
    scale = (gamma * jax.lax.rsqrt(var + 1e-5)).astype(f32)   # [1, HD]
    shift = (beta - mean * scale).astype(f32)                 # [1, HD]

    # ---- pass 3: BN + ELU (+ residual), row-tiled epilogue -------------------
    bn_per_row = 4 * HD * 4 + (2 * in_dim * 4 if residual else 0)
    Tb = _pick_rows_tile(n, bn_per_row, 4 * HD * 4, budget)
    in_specs = [pl.BlockSpec((Tb, HD), lambda i: (i, 0))]
    args = [h_agg]
    if residual:
        assert in_dim == HD, "residual requires in_dim == out_dim * num_heads"
        kernel = _bn_elu_res_kernel
        in_specs.append(pl.BlockSpec((Tb, in_dim), lambda i: (i, 0)))
        args.append(h.astype(f32))
    else:
        kernel = _bn_elu_kernel
    in_specs += [pl.BlockSpec((1, HD), const2, pipeline_mode=inv1),
                 pl.BlockSpec((1, HD), const2, pipeline_mode=inv1)]
    args += [scale, shift]

    return pl.pallas_call(
        kernel,
        grid=(n // Tb,),
        in_specs=in_specs,
        out_specs=pl.BlockSpec((Tb, HD), lambda i: (i, 0)),
        out_shape=jax.ShapeDtypeStruct((n, HD), f32),
        compiler_params=cparams(),
    )(*args)


# ---------------------------------------------------------------- reference --

def reference(h, w_t, attn_l, attn_r, gamma, beta, *, num_heads, out_dim, residual):
    n, in_dim = h.shape
    H, D = num_heads, out_dim
    z = h @ w_t                                     # [n, H*D]
    z3 = z.reshape(n, H, D)
    el = (z3 * attn_l[None]).sum(-1)                # [n, H]  source term
    er = (z3 * attn_r[None]).sum(-1)                # [n, H]  destination term
    logits = el[None, :, :] + er[:, None, :]        # [dst, src, H]
    logits = jnp.where(logits > 0, logits, 0.2 * logits)
    alpha = jax.nn.softmax(logits, axis=1)          # softmax over sources
    out = jnp.einsum('dsh,shf->dhf', alpha, z3).reshape(n, H * D)
    mean = out.mean(0, keepdims=True)
    var = ((out - mean) ** 2).mean(0, keepdims=True)
    y = (out - mean) / jnp.sqrt(var + 1e-5) * gamma + beta
    y = jnp.where(y > 0, y, jnp.expm1(jnp.minimum(y, 0.0)))
    if residual:
        y = h + y
    return y


# --------------------------------------------------------------------- main --

if __name__ == "__main__":
    # in_dim == num_heads*out_dim == 128 -> lane-dense output, active residual.
    # N = 128 (multiple of 128) so every pass gets a 2-step "parallel" grid.
    N, in_dim, out_dim, num_heads = 128, 128, 32, 4
    residual = True

    key = jax.random.PRNGKey(0)
    k1, k2, k3, k4, k5, k6 = jax.random.split(key, 6)
    h = jax.random.normal(k1, (N, in_dim), jnp.float32)
    # PyTorch fc weight is [H*D, in_dim]; we store its transpose [in_dim, H*D].
    w_t = 0.1 * jax.random.normal(k2, (in_dim, num_heads * out_dim), jnp.float32)
    attn_l = 0.2 * jax.random.normal(k3, (num_heads, out_dim), jnp.float32)
    attn_r = 0.2 * jax.random.normal(k4, (num_heads, out_dim), jnp.float32)
    gamma = 1.0 + 0.1 * jax.random.normal(k5, (1, num_heads * out_dim), jnp.float32)
    beta = 0.1 * jax.random.normal(k6, (1, num_heads * out_dim), jnp.float32)

    # Production default path (bf16 matmul operands, f32 accumulation): smoke
    # run.  Elementwise parity of bf16 vs an f32 reference is NOT a meaningful
    # check for this layer: batch-stat BatchNorm on complete-graph GAT outputs
    # divides by per-column stds that can be tiny, amplifying benign rounding.
    out_bf16 = gat_layer_forward(h, w_t, attn_l, attn_r, gamma, beta,
                                 num_heads=num_heads, out_dim=out_dim,
                                 residual=residual)
    jax.block_until_ready(out_bf16)
    assert bool(jnp.all(jnp.isfinite(out_bf16))), "bf16 path produced non-finite values"

    # f32 compute path for the tight numerical check against the reference.
    out = gat_layer_forward(h, w_t, attn_l, attn_r, gamma, beta,
                            num_heads=num_heads, out_dim=out_dim,
                            residual=residual, compute_dtype=jnp.float32)
    jax.block_until_ready(out)
    ref = reference(h, w_t, attn_l, attn_r, gamma, beta,
                    num_heads=num_heads, out_dim=out_dim, residual=residual)
    np.testing.assert_allclose(np.asarray(out), np.asarray(ref),
                               rtol=2e-2, atol=2e-2)
    print("KERNEL_OK")
</pallas_src>

<mosaic_0001>
module attributes {stable_mosaic.version = 11 : i64} {
  func.func @_proj_kernel(%arg0: i32, %arg1: memref<64x128xf32, #tpu.memory_space<vmem>>, %arg2: memref<128x128xf32, #tpu.memory_space<vmem>>, %arg3: memref<128x4xf32, #tpu.memory_space<vmem>>, %arg4: memref<128x4xf32, #tpu.memory_space<vmem>>, %arg5: memref<64x128xbf16, #tpu.memory_space<vmem>>, %arg6: memref<64x4xf32, #tpu.memory_space<vmem>>, %arg7: memref<64x4xf32, #tpu.memory_space<vmem>>) attributes {dimension_semantics = [#tpu.dimension_semantics<parallel>], iteration_bounds = array<i64: 2>, scalar_prefetch = 0 : i64, scratch_operands = 0 : i64, tpu.core_type = #tpu.core_type<tc>, window_params = [{transform_indices = @transform_0, window_bounds = array<i64: 64, 128>}, {pipeline_mode = #tpu.pipeline_mode<synchronous>, transform_indices = @transform_1, window_bounds = array<i64: 128, 128>}, {pipeline_mode = #tpu.pipeline_mode<synchronous>, transform_indices = @transform_2, window_bounds = array<i64: 128, 4>}, {pipeline_mode = #tpu.pipeline_mode<synchronous>, transform_indices = @transform_3, window_bounds = array<i64: 128, 4>}, {transform_indices = @transform_4, window_bounds = array<i64: 64, 128>}, {transform_indices = @transform_5, window_bounds = array<i64: 64, 4>}, {transform_indices = @transform_6, window_bounds = array<i64: 64, 4>}]} {
    %c0 = arith.constant 0 : index
    %c0_0 = arith.constant 0 : index
    %0 = vector.load %arg1[%c0, %c0_0] : memref<64x128xf32, #tpu.memory_space<vmem>>, vector<64x128xf32>
    %1 = arith.truncf %0 : vector<64x128xf32> to vector<64x128xbf16>
    %c0_1 = arith.constant 0 : index
    %c0_2 = arith.constant 0 : index
    %2 = vector.load %arg2[%c0_1, %c0_2] : memref<128x128xf32, #tpu.memory_space<vmem>>, vector<128x128xf32>
    %3 = arith.truncf %2 : vector<128x128xf32> to vector<128x128xbf16>
    %cst = arith.constant dense<0.000000e+00> : vector<64x128xf32>
    %4 = tpu.matmul %1, %3, %cst {dimension_numbers = #tpu.dot_dimension_numbers<[1], [0], [0], [1], [0, 0, 1, 1], [], []>} : vector<64x128xbf16>, vector<128x128xbf16>, vector<64x128xf32> -> vector<64x128xf32>
    %5 = arith.truncf %4 : vector<64x128xf32> to vector<64x128xbf16>
    %c0_3 = arith.constant 0 : index
    %c0_4 = arith.constant 0 : index
    %6 = vector.load %arg5[%c0_3, %c0_4] : memref<64x128xbf16, #tpu.memory_space<vmem>>, vector<64x128xbf16>
    tpu.vector_store %arg5[%c0_3, %c0_4], %5 {strides = array<i32>} : memref<64x128xbf16, #tpu.memory_space<vmem>>, vector<64x128xbf16>,
    %c0_5 = arith.constant 0 : index
    %c0_6 = arith.constant 0 : index
    %7 = vector.load %arg3[%c0_5, %c0_6] : memref<128x4xf32, #tpu.memory_space<vmem>>, vector<128x4xf32>
    %8 = arith.truncf %7 : vector<128x4xf32> to vector<128x4xbf16>
    %cst_7 = arith.constant dense<0.000000e+00> : vector<64x4xf32>
    %9 = tpu.matmul %1, %8, %cst_7 {dimension_numbers = #tpu.dot_dimension_numbers<[1], [0], [0], [1], [0, 0, 1, 1], [], []>} : vector<64x128xbf16>, vector<128x4xbf16>, vector<64x4xf32> -> vector<64x4xf32>
    %c0_8 = arith.constant 0 : index
    %c0_9 = arith.constant 0 : index
    %10 = vector.load %arg6[%c0_8, %c0_9] : memref<64x4xf32, #tpu.memory_space<vmem>>, vector<64x4xf32>
    tpu.vector_store %arg6[%c0_8, %c0_9], %9 {strides = array<i32>} : memref<64x4xf32, #tpu.memory_space<vmem>>, vector<64x4xf32>,
    %c0_10 = arith.constant 0 : index
    %c0_11 = arith.constant 0 : index
    %11 = vector.load %arg4[%c0_10, %c0_11] : memref<128x4xf32, #tpu.memory_space<vmem>>, vector<128x4xf32>
    %12 = arith.truncf %11 : vector<128x4xf32> to vector<128x4xbf16>
    %cst_12 = arith.constant dense<0.000000e+00> : vector<64x4xf32>
    %13 = tpu.matmul %1, %12, %cst_12 {dimension_numbers = #tpu.dot_dimension_numbers<[1], [0], [0], [1], [0, 0, 1, 1], [], []>} : vector<64x128xbf16>, vector<128x4xbf16>, vector<64x4xf32> -> vector<64x4xf32>
    %c0_13 = arith.constant 0 : index
    %c0_14 = arith.constant 0 : index
    %14 = vector.load %arg7[%c0_13, %c0_14] : memref<64x4xf32, #tpu.memory_space<vmem>>, vector<64x4xf32>
    tpu.vector_store %arg7[%c0_13, %c0_14], %13 {strides = array<i32>} : memref<64x4xf32, #tpu.memory_space<vmem>>, vector<64x4xf32>,
    return
  }
  func.func @transform_0(%arg0: i32) -> (i32, i32) {
    %c0_i32 = arith.constant 0 : i32
    %c0_i32_0 = arith.constant 0 : i32
    return %arg0, %c0_i32 : i32, i32
  }
  func.func @transform_1(%arg0: i32) -> (i32, i32) {
    %c0_i32 = arith.constant 0 : i32
    %c0_i32_0 = arith.constant 0 : i32
    %c0_i32_1 = arith.constant 0 : i32
    return %c0_i32, %c0_i32_0 : i32, i32
  }
  func.func @transform_2(%arg0: i32) -> (i32, i32) {
    %c0_i32 = arith.constant 0 : i32
    %c0_i32_0 = arith.constant 0 : i32
    %c0_i32_1 = arith.constant 0 : i32
    return %c0_i32, %c0_i32_0 : i32, i32
  }
  func.func @transform_3(%arg0: i32) -> (i32, i32) {
    %c0_i32 = arith.constant 0 : i32
    %c0_i32_0 = arith.constant 0 : i32
    %c0_i32_1 = arith.constant 0 : i32
    return %c0_i32, %c0_i32_0 : i32, i32
  }
  func.func @transform_4(%arg0: i32) -> (i32, i32) {
    %c0_i32 = arith.constant 0 : i32
    %c0_i32_0 = arith.constant 0 : i32
    return %arg0, %c0_i32 : i32, i32
  }
  func.func @transform_5(%arg0: i32) -> (i32, i32) {
    %c0_i32 = arith.constant 0 : i32
    %c0_i32_0 = arith.constant 0 : i32
    return %arg0, %c0_i32 : i32, i32
  }
  func.func @transform_6(%arg0: i32) -> (i32, i32) {
    %c0_i32 = arith.constant 0 : i32
    %c0_i32_0 = arith.constant 0 : i32
    return %arg0, %c0_i32 : i32, i32
  }
}

</mosaic_0001>

<llo_original>
// kernel: tpu_custom_call.1
$region0: #{tpu_custom_call.1}
  #allocation0 [shape = 'u32[]', space=smem, size = 0x4, offset = 0x4, fixed_abs, tag = 'smem constant byte address 0x4 - core index']
  #allocation1 [shape = 'u32[144,128]{1,0:T(1,128)}', space=vmem, size = 0x12000, scoped, tag = 'internal scratch']
  %s0 = inlined_call_operand.vmem [shape: f32[128,128], index: 0, kind: input, shape index: {}]
  %s1 = inlined_call_operand.vmem [shape: f32[128,128], index: 1, kind: input, shape index: {}]
  %s2 = inlined_call_operand.vmem [shape: f32[128,4], index: 2, kind: input, shape index: {}]
  %s3 = inlined_call_operand.vmem [shape: f32[128,4], index: 3, kind: input, shape index: {}]
  %s4 = inlined_call_operand.hbm [shape: bf16[128,128], index: 4, kind: output, shape index: {0}]
  %s5 = inlined_call_operand.vmem [shape: f32[128,4], index: 5, kind: output, shape index: {1}]
  %s6 = inlined_call_operand.vmem [shape: f32[128,4], index: 6, kind: output, shape index: {2}]
  %7 = xla_tuple %s4, %s5, %s6
  %s8 = sld [smem:[#allocation0]]
  $region65: #{tpu_custom_call.1} parent=0
    _
  %s10 = ssub.s32 1, %s8
  %s11 = scalar_select 0, %s10, %s8
  $region1: #{tpu_custom_call.1} parent=0
    #allocation2 [shape = 'u8[32768]{0}', space=vmem, size = 0x8000, scoped, tag = 'output window, operand 0']
    #allocation3 [shape = 's32[2]{0}', space=sflag, size = 0x8, scoped, tag = 'scoped memory for tpu_custom_call.1']
    %12 = vsyncpa [#allocation3], 0
    %s13 = scalar_lea.sflag [#allocation3], 1
    %14 = vsyncpa %s13, 0
    loop: start=0, step=1, limit=4
    $region2: #{tpu_custom_call.1} parent=1 // loop_pre_header
      _
    $region3: #{tpu_custom_call.1} parent=1 // loop_header
      %s16 = sphi 0, %s20
      %p17 = scmp.ge.s32.totalorder %s16, 4
      %s26 = sphi 0, %s28
      %s29 = sphi 0, %s26
      %s30 = sphi 0, %s29
      %s46 = sphi 0, %s30
      %s50 = sphi 0, %s50
      %s52 = sphi 0, %s50
      %s53 = sphi 0, %s52
      %s67 = sphi 0, %s53
      %s71 = sphi 0, %s71
      %s73 = sphi 0, %s71
      %s74 = sphi 0, %s73
      %s88 = sphi 0, %s74
      %s92 = sphi 0, %s92
      %s94 = sphi 0, %s92
      %s95 = sphi 0, %s94
      %s109 = sphi 0, %s95
      %s115 = sphi 0, %s117
      %s118 = sphi 0, %s115
      %s119 = sphi 0, %s118
      %s135 = sphi 0, %s119
      %s141 = sphi 0, %s143
      %s144 = sphi 0, %s141
      %s145 = sphi 0, %s144
      %s161 = sphi 0, %s145
      %s167 = sphi 0, %s169
      %s170 = sphi 0, %s167
      %s171 = sphi 0, %s170
      %s187 = sphi 0, %s171
    $region4: #{tpu_custom_call.1} parent=1 // loop_header_branch
      %19 = sbr.rel (%p17) target = $region8
    $region5: #{tpu_custom_call.1} parent=1 // loop_body
      %s21 = ssub.s32 %s16, 1
      %s22 = ssub.s32 %s16, 2
      %s23 = sadd.s32 %s16, 1
      %s24 = ssub.s32 %s16, %s23
      %p25 = scmp.eq.s32.totalorder %s24, 0
      %s27 = sadd.s32 %s26, 1
      %s28 = scalar_select %p25, %s26, %s27
      %p31 = pneg %p25
      %p32 = scmp.eq.s32.totalorder %s16, 1
      %p33 = por %p31, %p32
      %p34 = scmp.ne.s32.totalorder %s26, %s29
      %p35 = scmp.eq.s32.totalorder %s16, 0
      %p36 = por %p34, %p35
      %p37 = scmp.ne.s32.totalorder %s26, %s29
      %p38 = scmp.eq.s32.totalorder %s21, 1
      %p39 = por %p37, %p38
      %p40 = scmp.ne.s32.totalorder %s29, %s30
      %p41 = scmp.eq.s32.totalorder %s21, 0
      %p42 = por %p40, %p41
      %p43 = scmp.ne.s32.totalorder %s29, %s30
      %p44 = scmp.eq.s32.totalorder %s22, 1
      %p45 = por %p43, %p44
      %p47 = scmp.ne.s32.totalorder %s30, %s46
      %p48 = scmp.eq.s32.totalorder %s22, 0
      %p49 = por %p47, %p48
      %s51 = sadd.s32 %s50, 1
      %p54 = scmp.eq.s32.totalorder %s16, 1
      %p55 = scmp.ne.s32.totalorder %s50, %s52
      %p56 = scmp.eq.s32.totalorder %s16, 0
      %p57 = por %p55, %p56
      %p58 = scmp.ne.s32.totalorder %s50, %s52
      %p59 = scmp.eq.s32.totalorder %s21, 1
      %p60 = por %p58, %p59
      %p61 = scmp.ne.s32.totalorder %s52, %s53
      %p62 = scmp.eq.s32.totalorder %s21, 0
      %p63 = por %p61, %p62
      %p64 = scmp.ne.s32.totalorder %s52, %s53
      %p65 = scmp.eq.s32.totalorder %s22, 1
      %p66 = por %p64, %p65
      %p68 = scmp.ne.s32.totalorder %s53, %s67
      %p69 = scmp.eq.s32.totalorder %s22, 0
      %p70 = por %p68, %p69
      %s72 = sadd.s32 %s71, 1
      %p75 = scmp.eq.s32.totalorder %s16, 1
      %p76 = scmp.ne.s32.totalorder %s71, %s73
      %p77 = scmp.eq.s32.totalorder %s16, 0
      %p78 = por %p76, %p77
      %p79 = scmp.ne.s32.totalorder %s71, %s73
      %p80 = scmp.eq.s32.totalorder %s21, 1
      %p81 = por %p79, %p80
      %p82 = scmp.ne.s32.totalorder %s73, %s74
      %p83 = scmp.eq.s32.totalorder %s21, 0
      %p84 = por %p82, %p83
      %p85 = scmp.ne.s32.totalorder %s73, %s74
      %p86 = scmp.eq.s32.totalorder %s22, 1
      %p87 = por %p85, %p86
      %p89 = scmp.ne.s32.totalorder %s74, %s88
      %p90 = scmp.eq.s32.totalorder %s22, 0
      %p91 = por %p89, %p90
      %s93 = sadd.s32 %s92, 1
      %p96 = scmp.eq.s32.totalorder %s16, 1
      %p97 = scmp.ne.s32.totalorder %s92, %s94
      %p98 = scmp.eq.s32.totalorder %s16, 0
      %p99 = por %p97, %p98
      %p100 = scmp.ne.s32.totalorder %s92, %s94
      %p101 = scmp.eq.s32.totalorder %s21, 1
      %p102 = por %p100, %p101
      %p103 = scmp.ne.s32.totalorder %s94, %s95
      %p104 = scmp.eq.s32.totalorder %s21, 0
      %p105 = por %p103, %p104
      %p106 = scmp.ne.s32.totalorder %s94, %s95
      %p107 = scmp.eq.s32.totalorder %s22, 1
      %p108 = por %p106, %p107
      %p110 = scmp.ne.s32.totalorder %s95, %s109
      %p111 = scmp.eq.s32.totalorder %s22, 0
      %p112 = por %p110, %p111
      %s113 = ssub.s32 %s16, %s23
      %p114 = scmp.eq.s32.totalorder %s113, 0
      %s116 = sadd.s32 %s115, 1
      %s117 = scalar_select %p114, %s115, %s116
      %p120 = pneg %p114
      %p121 = scmp.eq.s32.totalorder %s16, 1
      %p122 = por %p120, %p121
      %p123 = scmp.ne.s32.totalorder %s115, %s118
      %p124 = scmp.eq.s32.totalorder %s16, 0
      %p125 = por %p123, %p124
      %p126 = scmp.ne.s32.totalorder %s115, %s118
      %p127 = scmp.eq.s32.totalorder %s21, 1
      %p128 = por %p126, %p127
      %p129 = scmp.ne.s32.totalorder %s118, %s119
      %p130 = scmp.eq.s32.totalorder %s21, 0
      %p131 = por %p129, %p130
      %p132 = scmp.ne.s32.totalorder %s118, %s119
      %p133 = scmp.eq.s32.totalorder %s22, 1
      %p134 = por %p132, %p133
      %p136 = scmp.ne.s32.totalorder %s119, %s135
      %p137 = scmp.eq.s32.totalorder %s22, 0
      %p138 = por %p136, %p137
      %s139 = ssub.s32 %s16, %s23
      %p140 = scmp.eq.s32.totalorder %s139, 0
      %s142 = sadd.s32 %s141, 1
      %s143 = scalar_select %p140, %s141, %s142
      %p146 = pneg %p140
      %p147 = scmp.eq.s32.totalorder %s16, 1
      %p148 = por %p146, %p147
      %p149 = scmp.ne.s32.totalorder %s141, %s144
      %p150 = scmp.eq.s32.totalorder %s16, 0
      %p151 = por %p149, %p150
      %p152 = scmp.ne.s32.totalorder %s141, %s144
      %p153 = scmp.eq.s32.totalorder %s21, 1
      %p154 = por %p152, %p153
      %p155 = scmp.ne.s32.totalorder %s144, %s145
      %p156 = scmp.eq.s32.totalorder %s21, 0
      %p157 = por %p155, %p156
      %p158 = scmp.ne.s32.totalorder %s144, %s145
      %p159 = scmp.eq.s32.totalorder %s22, 1
      %p160 = por %p158, %p159
      %p162 = scmp.ne.s32.totalorder %s145, %s161
      %p163 = scmp.eq.s32.totalorder %s22, 0
      %p164 = por %p162, %p163
      %s165 = ssub.s32 %s16, %s23
      %p166 = scmp.eq.s32.totalorder %s165, 0
      %s168 = sadd.s32 %s167, 1
      %s169 = scalar_select %p166, %s167, %s168
      %p172 = pneg %p166
      %p173 = scmp.eq.s32.totalorder %s16, 1
      %p174 = por %p172, %p173
      %p175 = scmp.ne.s32.totalorder %s167, %s170
      %p176 = scmp.eq.s32.totalorder %s16, 0
      %p177 = por %p175, %p176
      %p178 = scmp.ne.s32.totalorder %s167, %s170
      %p179 = scmp.eq.s32.totalorder %s21, 1
      %p180 = por %p178, %p179
      %p181 = scmp.ne.s32.totalorder %s170, %s171
      %p182 = scmp.eq.s32.totalorder %s21, 0
      %p183 = por %p181, %p182
      %p184 = scmp.ne.s32.totalorder %s170, %s171
      %p185 = scmp.eq.s32.totalorder %s22, 1
      %p186 = por %p184, %p185
      %p188 = scmp.ne.s32.totalorder %s171, %s187
      %p189 = scmp.eq.s32.totalorder %s22, 0
      %p190 = por %p188, %p189
      %p191 = scmp.le.s32.totalorder 1, %s16
      %p192 = scmp.lt.s32.totalorder %s16, 3
      %p193 = pnand %p191, %p192
      %p194 = pneg %p193
      // Predicated region
      $region9: #{tpu_custom_call.1} parent=5 // pred_check
        _
      $region10: #{tpu_custom_call.1} parent=5 // pred_check_branch
        %196 = sbr.rel (%p193) target = $region12
      $region11: #{tpu_custom_call.1} parent=5 // pred_region
        %s197 = ssub.s32 %s16, 1
        // Predicated region
        $region13: #{tpu_custom_call.1} parent=11 // pred_check
          %p198 = pneg %p63
        $region14: #{tpu_custom_call.1} parent=11 // pred_check_branch
          %200 = sbr.rel (%p198) target = $region16
        $region15: #{tpu_custom_call.1} parent=11 // pred_region
          _
        $region16: #{tpu_custom_call.1} parent=11 // pred_fallthru
          _
        // Predicated region
        $region17: #{tpu_custom_call.1} parent=11 // pred_check
          %p201 = pneg %p84
        $region18: #{tpu_custom_call.1} parent=11 // pred_check_branch
          %203 = sbr.rel (%p201) target = $region20
        $region19: #{tpu_custom_call.1} parent=11 // pred_region
          _
        $region20: #{tpu_custom_call.1} parent=11 // pred_fallthru
          _
        // Predicated region
        $region21: #{tpu_custom_call.1} parent=11 // pred_check
          %p204 = pneg %p105
        $region22: #{tpu_custom_call.1} parent=11 // pred_check_branch
          %206 = sbr.rel (%p204) target = $region24
        $region23: #{tpu_custom_call.1} parent=11 // pred_region
          _
        $region24: #{tpu_custom_call.1} parent=11 // pred_fallthru
          _
      $region12: #{tpu_custom_call.1} parent=5 // pred_fallthru
        _
      %p207 = scmp.lt.s32.totalorder %s16, 2
      // Predicated region
      $region25: #{tpu_custom_call.1} parent=5 // pred_check
        %p208 = pneg %p207
      $region26: #{tpu_custom_call.1} parent=5 // pred_check_branch
        %210 = sbr.rel (%p208) target = $region28
      $region27: #{tpu_custom_call.1} parent=5 // pred_region
        // Predicated region
        $region29: #{tpu_custom_call.1} parent=27 // pred_check
          %p211 = pneg %p36
        $region30: #{tpu_custom_call.1} parent=27 // pred_check_branch
          %213 = sbr.rel (%p211) target = $region32
        $region31: #{tpu_custom_call.1} parent=27 // pred_region
          %s214 = smul.u32 8, %s16
          %p215 = scmp.lt.s32.totalorder %s214, 15
          %s216 = scalar_select %p215, %s214, 15
          %s217 = smul.addr %s216, 8
          %s218 = scalar_lea.vmem %s0, %s217
          %s219 = smul.u32 8, %s16
        $region32: #{tpu_custom_call.1} parent=27 // pred_fallthru
          _
      $region28: #{tpu_custom_call.1} parent=5 // pred_fallthru
        _
      %p220 = scmp.le.s32.totalorder 1, %s16
      %p221 = scmp.lt.s32.totalorder %s16, 3
      %p222 = pnand %p220, %p221
      %p223 = pneg %p222
      // Predicated region
      $region33: #{tpu_custom_call.1} parent=5 // pred_check
        _
      $region34: #{tpu_custom_call.1} parent=5 // pred_check_branch
        %225 = sbr.rel (%p222) target = $region36
      $region35: #{tpu_custom_call.1} parent=5 // pred_region
        %s226 = ssub.s32 %s16, 1
        %s227 = smul.u32 8, %s21
        %p228 = scmp.lt.s32.totalorder %s227, 15
        %s229 = scalar_select %p228, %s227, 15
        %s230 = smul.addr %s229, 8
        %s231 = scalar_lea.vmem %s0, %s230
        %p232 = pneg %p42
        %p233 = pneg %p39
        %p234 = pneg %p63
        %p235 = pneg %p60
        %p236 = pneg %p84
        %p237 = pneg %p81
        %p238 = pneg %p105
        %p239 = pneg %p102
        %p240 = pneg %p131
        %p241 = pneg %p128
        %s242 = sand.u32 %s118, 1
        %s243 = scalar_lea.sflag [#allocation3], %s242
        %s244 = sand.u32 %s118, 1
        %s245 = smul.addr %s244, 32
        %s246 = scalar_lea.vmem [#allocation2], %s245
        %p247 = pneg %p157
        %p248 = pneg %p154
        %s249 = smul.u32 8, %s21
        %p250 = scmp.lt.s32.totalorder %s249, 15
        %s251 = scalar_select %p250, %s249, 15
        %s252 = smul.addr %s251, 8
        %s253 = scalar_lea.vmem %s5, %s252
        %p254 = pneg %p183
        %p255 = pneg %p180
        %s256 = smul.u32 8, %s21
        %p257 = scmp.lt.s32.totalorder %s256, 15
        %s258 = scalar_select %p257, %s256, 15
        %s259 = smul.addr %s258, 8
        %s260 = scalar_lea.vmem %s6, %s259
        %s261 = smul.u32 8, %s21
        %p262 = scmp.lt.s32.totalorder %s261, 15
        %s263 = scalar_select %p262, %s261, 15
        %s264 = smul.addr %s263, 8
        %s265 = scalar_lea.vmem %s0, %s264
        %s266 = smul.u32 8, %s21
        %s267 = smul.u32 8, %s21
        %s268 = smul.u32 8, %s21
        %p269 = scmp.lt.s32.totalorder %s268, 15
        %s270 = scalar_select %p269, %s268, 15
        %s271 = smul.addr %s270, 8
        %s272 = scalar_lea.vmem %s5, %s271
        %s273 = smul.u32 8, %s21
        %s274 = smul.u32 8, %s21
        %p275 = scmp.lt.s32.totalorder %s274, 15
        %s276 = scalar_select %p275, %s274, 15
        %s277 = smul.addr %s276, 8
        %s278 = scalar_lea.vmem %s6, %s277
        %s279 = smul.u32 8, %s21
        %v281 = vld [vmem:[%s265] sm:$0xff]
        %v282 = vld [vmem:[%s265 + $0x8] sm:$0xff]
        %v283 = vld [vmem:[%s265 + $0x10] sm:$0xff]
        %v284 = vld [vmem:[%s265 + $0x18] sm:$0xff]
        %v285 = vld [vmem:[%s265 + $0x20] sm:$0xff]
        %v286 = vld [vmem:[%s265 + $0x28] sm:$0xff]
        %v287 = vld [vmem:[%s265 + $0x30] sm:$0xff]
        %v288 = vld [vmem:[%s265 + $0x38] sm:$0xff]
        %v289 = vpack.c.bf16 %v282, %v281
        %v290 = vpack.c.bf16 %v284, %v283
        %v291 = vpack.c.bf16 %v286, %v285
        %v292 = vpack.c.bf16 %v288, %v287
        %v293 = vld [vmem:[%s1] sm:$0xff]
        %v294 = vld [vmem:[%s1 + $0x8] sm:$0xff]
        %v295 = vld [vmem:[%s1 + $0x10] sm:$0xff]
        %v296 = vld [vmem:[%s1 + $0x18] sm:$0xff]
        %v297 = vld [vmem:[%s1 + $0x20] sm:$0xff]
        %v298 = vld [vmem:[%s1 + $0x28] sm:$0xff]
        %v299 = vld [vmem:[%s1 + $0x30] sm:$0xff]
        %v300 = vld [vmem:[%s1 + $0x38] sm:$0xff]
        %v301 = vld [vmem:[%s1 + $0x40] sm:$0xff]
        %v302 = vld [vmem:[%s1 + $0x48] sm:$0xff]
        %v303 = vld [vmem:[%s1 + $0x50] sm:$0xff]
        %v304 = vld [vmem:[%s1 + $0x58] sm:$0xff]
        %v305 = vld [vmem:[%s1 + $0x60] sm:$0xff]
        %v306 = vld [vmem:[%s1 + $0x68] sm:$0xff]
        %v307 = vld [vmem:[%s1 + $0x70] sm:$0xff]
        %v308 = vld [vmem:[%s1 + $0x78] sm:$0xff]
        %v309 = vpack.c.bf16 %v294, %v293
        %v310 = vpack.c.bf16 %v296, %v295
        %v311 = vpack.c.bf16 %v298, %v297
        %v312 = vpack.c.bf16 %v300, %v299
        %v313 = vpack.c.bf16 %v302, %v301
        %v314 = vpack.c.bf16 %v304, %v303
        %v315 = vpack.c.bf16 %v306, %v305
        %v316 = vpack.c.bf16 %v308, %v307
        %317 = vmatprep.subr.bf16.mxu0 0
        %318 = vmatpush1.bf16.msra.mxu0 %v316
        %319 = vmatprep.subr.bf16.mxu0 0
        %320 = vmatpush1.bf16.msra.mxu0 %v315
        %321 = vmatprep.subr.bf16.mxu0 0
        %322 = vmatpush1.bf16.msra.mxu0 %v314
        %323 = vmatprep.subr.bf16.mxu0 0
        %324 = vmatpush1.bf16.msra.mxu0 %v313
        %325 = vmatprep.subr.bf16.mxu0 0
        %326 = vmatpush1.bf16.msra.mxu0 %v312
        %327 = vmatprep.subr.bf16.mxu0 0
        %328 = vmatpush1.bf16.msra.mxu0 %v311
        %329 = vmatprep.subr.bf16.mxu0 0
        %330 = vmatpush1.bf16.msra.mxu0 %v310
        %331 = vmatprep.subr.bf16.mxu0 0
        %332 = vmatpush1.bf16.msra.mxu0 %v309
        %333 = vmatprep.subr.bf16.mxu0 0
        %334 = vmatpush2.bf16.msra.mxu0 0
        %335 = vmatprep.subr.bf16.mxu0 0
        %336 = vmatpush2.bf16.msra.mxu0 0
        %337 = vmatprep.subr.bf16.mxu0 0
        %338 = vmatpush2.bf16.msra.mxu0 0
        %339 = vmatprep.subr.bf16.mxu0 0
        %340 = vmatpush2.bf16.msra.mxu0 0
        %341 = vmatprep.subr.bf16.mxu0 0
        %342 = vmatpush2.bf16.msra.mxu0 0
        %343 = vmatprep.subr.bf16.mxu0 0
        %344 = vmatpush2.bf16.msra.mxu0 0
        %345 = vmatprep.subr.bf16.mxu0 0
        %346 = vmatpush2.bf16.msra.mxu0 0
        %347 = vmatprep.subr.bf16.mxu0 0
        %348 = vmatpush2.bf16.msra.mxu0 0
        %349 = vmatprep.mubr.bf16.mxu0 0
        %350 = vmatmul.mubr.bf16.gmra.mxu0 %v289
        %v351 = vpop.f32.mrf.mxu0
        %v352 = vadd.f32 0.0, %v351
        %v353 = vpop.f32.mrf.mxu0
        %v354 = vpop.f32.mrf.mxu0
        %v355 = vadd.f32 0.0, %v354
        %v356 = vpop.f32.mrf.mxu0
        %357 = vmatprep.mubr.bf16.mxu0 0
        %358 = vmatmul.mubr.bf16.gmra.mxu0 %v290
        %v359 = vpop.f32.mrf.mxu0
        %v360 = vadd.f32 0.0, %v359
        %v361 = vpop.f32.mrf.mxu0
        %v362 = vpop.f32.mrf.mxu0
        %v363 = vadd.f32 0.0, %v362
        %v364 = vpop.f32.mrf.mxu0
        %365 = vmatprep.mubr.bf16.mxu0 0
        %366 = vmatmul.mubr.bf16.gmra.mxu0 %v291
        %v367 = vpop.f32.mrf.mxu0
        %v368 = vadd.f32 0.0, %v367
        %v369 = vpop.f32.mrf.mxu0
        %v370 = vpop.f32.mrf.mxu0
        %v371 = vadd.f32 0.0, %v370
        %v372 = vpop.f32.mrf.mxu0
        %373 = vmatprep.mubr.bf16.mxu0 0
        %374 = vmatmul.mubr.bf16.gmra.mxu0 %v292
        %v375 = vpop.f32.mrf.mxu0
        %v376 = vadd.f32 0.0, %v375
        %v377 = vpop.f32.mrf.mxu0
        %v378 = vpop.f32.mrf.mxu0
        %v379 = vadd.f32 0.0, %v378
        %v380 = vpop.f32.mrf.mxu0
        %381 = vdwg.mxu0
        %v382 = vpack.c.bf16 %v355, %v352
        %v383 = vpack.c.bf16 %v363, %v360
        %v384 = vpack.c.bf16 %v371, %v368
        %v385 = vpack.c.bf16 %v379, %v376
        %v390 = vunpack.c.l.b16 %v382
        %v391 = vunpack.c.h.b16 %v382
        %v392 = vunpack.c.l.b16 %v383
        %v393 = vunpack.c.h.b16 %v383
        %v394 = vunpack.c.l.b16 %v384
        %v395 = vunpack.c.h.b16 %v384
        %v396 = vunpack.c.l.b16 %v385
        %v397 = vunpack.c.h.b16 %v385
        %v398 = vpack.c.b16 %v390, %v390
        %v399 = vpack.c.b16 %v391, %v391
        %v400 = vpack.c.b16 %v392, %v392
        %v401 = vpack.c.b16 %v393, %v393
        %v402 = vpack.c.b16 %v394, %v394
        %v403 = vpack.c.b16 %v395, %v395
        %v404 = vpack.c.b16 %v396, %v396
        %v405 = vpack.c.b16 %v397, %v397
        %414 = vst [vmem:[%s246] sm:$0xf] %v398
        %415 = vst [vmem:[%s246 + $0x4] sm:$0xf] %v399
        %416 = vst [vmem:[%s246 + $0x8] sm:$0xf] %v400
        %417 = vst [vmem:[%s246 + $0xc] sm:$0xf] %v401
        %418 = vst [vmem:[%s246 + $0x10] sm:$0xf] %v402
        %419 = vst [vmem:[%s246 + $0x14] sm:$0xf] %v403
        %420 = vst [vmem:[%s246 + $0x18] sm:$0xf] %v404
        %421 = vst [vmem:[%s246 + $0x1c] sm:$0xf] %v405
        %v422 = vld [vmem:[%s2] sm:$0xff]
        %v423 = vld [vmem:[%s2 + $0x8] sm:$0xff]
        %v424 = vld [vmem:[%s2 + $0x10] sm:$0xff]
        %v425 = vld [vmem:[%s2 + $0x18] sm:$0xff]
        %v426 = vld [vmem:[%s2 + $0x20] sm:$0xff]
        %v427 = vld [vmem:[%s2 + $0x28] sm:$0xff]
        %v428 = vld [vmem:[%s2 + $0x30] sm:$0xff]
        %v429 = vld [vmem:[%s2 + $0x38] sm:$0xff]
        %v430 = vld [vmem:[%s2 + $0x40] sm:$0xff]
        %v431 = vld [vmem:[%s2 + $0x48] sm:$0xff]
        %v432 = vld [vmem:[%s2 + $0x50] sm:$0xff]
        %v433 = vld [vmem:[%s2 + $0x58] sm:$0xff]
        %v434 = vld [vmem:[%s2 + $0x60] sm:$0xff]
        %v435 = vld [vmem:[%s2 + $0x68] sm:$0xff]
        %v436 = vld [vmem:[%s2 + $0x70] sm:$0xff]
        %v437 = vld [vmem:[%s2 + $0x78] sm:$0xff]
        %v438 = vpack.c.bf16 %v423, %v422
        %v439 = vpack.c.bf16 %v425, %v424
        %v440 = vpack.c.bf16 %v427, %v426
        %v441 = vpack.c.bf16 %v429, %v428
        %v442 = vpack.c.bf16 %v431, %v430
        %v443 = vpack.c.bf16 %v433, %v432
        %v444 = vpack.c.bf16 %v435, %v434
        %v445 = vpack.c.bf16 %v437, %v436
        %446 = vmatprep.subr.bf16.mxu0 0
        %447 = vmatpush1.bf16.msra.mxu0 %v445
        %448 = vmatprep.subr.bf16.mxu0 0
        %449 = vmatpush1.bf16.msra.mxu0 %v444
        %450 = vmatprep.subr.bf16.mxu0 0
        %451 = vmatpush1.bf16.msra.mxu0 %v443
        %452 = vmatprep.subr.bf16.mxu0 0
        %453 = vmatpush1.bf16.msra.mxu0 %v442
        %454 = vmatprep.subr.bf16.mxu0 0
        %455 = vmatpush1.bf16.msra.mxu0 %v441
        %456 = vmatprep.subr.bf16.mxu0 0
        %457 = vmatpush1.bf16.msra.mxu0 %v440
        %458 = vmatprep.subr.bf16.mxu0 0
        %459 = vmatpush1.bf16.msra.mxu0 %v439
        %460 = vmatprep.subr.bf16.mxu0 0
        %461 = vmatpush1.bf16.msra.mxu0 %v438
        %462 = vmatprep.subr.bf16.mxu0 0
        %463 = vmatpush2.bf16.msra.mxu0 0
        %464 = vmatprep.subr.bf16.mxu0 0
        %465 = vmatpush2.bf16.msra.mxu0 0
        %466 = vmatprep.subr.bf16.mxu0 0
        %467 = vmatpush2.bf16.msra.mxu0 0
        %468 = vmatprep.subr.bf16.mxu0 0
        %469 = vmatpush2.bf16.msra.mxu0 0
        %470 = vmatprep.subr.bf16.mxu0 0
        %471 = vmatpush2.bf16.msra.mxu0 0
        %472 = vmatprep.subr.bf16.mxu0 0
        %473 = vmatpush2.bf16.msra.mxu0 0
        %474 = vmatprep.subr.bf16.mxu0 0
        %475 = vmatpush2.bf16.msra.mxu0 0
        %476 = vmatprep.subr.bf16.mxu0 0
        %477 = vmatpush2.bf16.msra.mxu0 0
        %478 = vmatprep.mubr.bf16.mxu0 0
        %479 = vmatmul.mubr.bf16.gmra.mxu0 %v289
        %v480 = vpop.f32.mrf.mxu0
        %v481 = vadd.f32 0.0, %v480
        %v482 = vpop.f32.mrf.mxu0
        %v483 = vpop.f32.mrf.mxu0
        %v484 = vadd.f32 0.0, %v483
        %v485 = vpop.f32.mrf.mxu0
        %486 = vmatprep.mubr.bf16.mxu0 0
        %487 = vmatmul.mubr.bf16.gmra.mxu0 %v290
        %v488 = vpop.f32.mrf.mxu0
        %v489 = vadd.f32 0.0, %v488
        %v490 = vpop.f32.mrf.mxu0
        %v491 = vpop.f32.mrf.mxu0
        %v492 = vadd.f32 0.0, %v491
        %v493 = vpop.f32.mrf.mxu0
        %494 = vmatprep.mubr.bf16.mxu0 0
        %495 = vmatmul.mubr.bf16.gmra.mxu0 %v291
        %v496 = vpop.f32.mrf.mxu0
        %v497 = vadd.f32 0.0, %v496
        %v498 = vpop.f32.mrf.mxu0
        %v499 = vpop.f32.mrf.mxu0
        %v500 = vadd.f32 0.0, %v499
        %v501 = vpop.f32.mrf.mxu0
        %502 = vmatprep.mubr.bf16.mxu0 0
        %503 = vmatmul.mubr.bf16.gmra.mxu0 %v292
        %v504 = vpop.f32.mrf.mxu0
        %v505 = vadd.f32 0.0, %v504
        %v506 = vpop.f32.mrf.mxu0
        %v507 = vpop.f32.mrf.mxu0
        %v508 = vadd.f32 0.0, %v507
        %v509 = vpop.f32.mrf.mxu0
        %510 = vdwg.mxu0
        %vm511 = vcmask 31744
        %512 = vst.msk [vmem:[%s272] sm:$0xff] %vm511, %v481
        %513 = vst.msk [vmem:[%s272 + $0x8] sm:$0xff] %vm511, %v484
        %514 = vst.msk [vmem:[%s272 + $0x10] sm:$0xff] %vm511, %v489
        %515 = vst.msk [vmem:[%s272 + $0x18] sm:$0xff] %vm511, %v492
        %516 = vst.msk [vmem:[%s272 + $0x20] sm:$0xff] %vm511, %v497
        %517 = vst.msk [vmem:[%s272 + $0x28] sm:$0xff] %vm511, %v500
        %518 = vst.msk [vmem:[%s272 + $0x30] sm:$0xff] %vm511, %v505
        %519 = vst.msk [vmem:[%s272 + $0x38] sm:$0xff] %vm511, %v508
        %v520 = vld [vmem:[%s3] sm:$0xff]
        %v521 = vld [vmem:[%s3 + $0x8] sm:$0xff]
        %v522 = vld [vmem:[%s3 + $0x10] sm:$0xff]
        %v523 = vld [vmem:[%s3 + $0x18] sm:$0xff]
        %v524 = vld [vmem:[%s3 + $0x20] sm:$0xff]
        %v525 = vld [vmem:[%s3 + $0x28] sm:$0xff]
        %v526 = vld [vmem:[%s3 + $0x30] sm:$0xff]
        %v527 = vld [vmem:[%s3 + $0x38] sm:$0xff]
        %v528 = vld [vmem:[%s3 + $0x40] sm:$0xff]
        %v529 = vld [vmem:[%s3 + $0x48] sm:$0xff]
        %v530 = vld [vmem:[%s3 + $0x50] sm:$0xff]
        %v531 = vld [vmem:[%s3 + $0x58] sm:$0xff]
        %v532 = vld [vmem:[%s3 + $0x60] sm:$0xff]
        %v533 = vld [vmem:[%s3 + $0x68] sm:$0xff]
        %v534 = vld [vmem:[%s3 + $0x70] sm:$0xff]
        %v535 = vld [vmem:[%s3 + $0x78] sm:$0xff]
        %v536 = vpack.c.bf16 %v521, %v520
        %v537 = vpack.c.bf16 %v523, %v522
        %v538 = vpack.c.bf16 %v525, %v524
        %v539 = vpack.c.bf16 %v527, %v526
        %v540 = vpack.c.bf16 %v529, %v528
        %v541 = vpack.c.bf16 %v531, %v530
        %v542 = vpack.c.bf16 %v533, %v532
        %v543 = vpack.c.bf16 %v535, %v534
        %544 = vmatprep.subr.bf16.mxu0 0
        %545 = vmatpush1.bf16.msra.mxu0 %v543
        %546 = vmatprep.subr.bf16.mxu0 0
        %547 = vmatpush1.bf16.msra.mxu0 %v542
        %548 = vmatprep.subr.bf16.mxu0 0
        %549 = vmatpush1.bf16.msra.mxu0 %v541
        %550 = vmatprep.subr.bf16.mxu0 0
        %551 = vmatpush1.bf16.msra.mxu0 %v540
        %552 = vmatprep.subr.bf16.mxu0 0
        %553 = vmatpush1.bf16.msra.mxu0 %v539
        %554 = vmatprep.subr.bf16.mxu0 0
        %555 = vmatpush1.bf16.msra.mxu0 %v538
        %556 = vmatprep.subr.bf16.mxu0 0
        %557 = vmatpush1.bf16.msra.mxu0 %v537
        %558 = vmatprep.subr.bf16.mxu0 0
        %559 = vmatpush1.bf16.msra.mxu0 %v536
        %560 = vmatprep.subr.bf16.mxu0 0
        %561 = vmatpush2.bf16.msra.mxu0 0
        %562 = vmatprep.subr.bf16.mxu0 0
        %563 = vmatpush2.bf16.msra.mxu0 0
        %564 = vmatprep.subr.bf16.mxu0 0
        %565 = vmatpush2.bf16.msra.mxu0 0
        %566 = vmatprep.subr.bf16.mxu0 0
        %567 = vmatpush2.bf16.msra.mxu0 0
        %568 = vmatprep.subr.bf16.mxu0 0
        %569 = vmatpush2.bf16.msra.mxu0 0
        %570 = vmatprep.subr.bf16.mxu0 0
        %571 = vmatpush2.bf16.msra.mxu0 0
        %572 = vmatprep.subr.bf16.mxu0 0
        %573 = vmatpush2.bf16.msra.mxu0 0
        %574 = vmatprep.subr.bf16.mxu0 0
        %575 = vmatpush2.bf16.msra.mxu0 0
        %576 = vmatprep.mubr.bf16.mxu0 0
        %577 = vmatmul.mubr.bf16.gmra.mxu0 %v289
        %v578 = vpop.f32.mrf.mxu0
        %v579 = vadd.f32 0.0, %v578
        %v580 = vpop.f32.mrf.mxu0
        %v581 = vpop.f32.mrf.mxu0
        %v582 = vadd.f32 0.0, %v581
        %v583 = vpop.f32.mrf.mxu0
        %584 = vmatprep.mubr.bf16.mxu0 0
        %585 = vmatmul.mubr.bf16.gmra.mxu0 %v290
        %v586 = vpop.f32.mrf.mxu0
        %v587 = vadd.f32 0.0, %v586
        %v588 = vpop.f32.mrf.mxu0
        %v589 = vpop.f32.mrf.mxu0
        %v590 = vadd.f32 0.0, %v589
        %v591 = vpop.f32.mrf.mxu0
        %592 = vmatprep.mubr.bf16.mxu0 0
        %593 = vmatmul.mubr.bf16.gmra.mxu0 %v291
        %v594 = vpop.f32.mrf.mxu0
        %v595 = vadd.f32 0.0, %v594
        %v596 = vpop.f32.mrf.mxu0
        %v597 = vpop.f32.mrf.mxu0
        %v598 = vadd.f32 0.0, %v597
        %v599 = vpop.f32.mrf.mxu0
        %600 = vmatprep.mubr.bf16.mxu0 0
        %601 = vmatmul.mubr.bf16.gmra.mxu0 %v292
        %v602 = vpop.f32.mrf.mxu0
        %v603 = vadd.f32 0.0, %v602
        %v604 = vpop.f32.mrf.mxu0
        %v605 = vpop.f32.mrf.mxu0
        %v606 = vadd.f32 0.0, %v605
        %v607 = vpop.f32.mrf.mxu0
        %608 = vdwg.mxu0
        %609 = vst.msk [vmem:[%s278] sm:$0xff] %vm511, %v579
        %610 = vst.msk [vmem:[%s278 + $0x8] sm:$0xff] %vm511, %v582
        %611 = vst.msk [vmem:[%s278 + $0x10] sm:$0xff] %vm511, %v587
        %612 = vst.msk [vmem:[%s278 + $0x18] sm:$0xff] %vm511, %v590
        %613 = vst.msk [vmem:[%s278 + $0x20] sm:$0xff] %vm511, %v595
        %614 = vst.msk [vmem:[%s278 + $0x28] sm:$0xff] %vm511, %v598
        %615 = vst.msk [vmem:[%s278 + $0x30] sm:$0xff] %vm511, %v603
        %616 = vst.msk [vmem:[%s278 + $0x38] sm:$0xff] %vm511, %v606
        %s617 = sand.u32 %s118, 1
        %s618 = scalar_lea.sflag [#allocation3], %s617
        %s619 = sand.u32 %s118, 1
        %s620 = smul.addr %s619, 32
        %s621 = scalar_lea.vmem [#allocation2], %s620
        %s622 = smul.u32 8, %s21
        %p623 = scmp.lt.s32.totalorder %s622, 15
        %s624 = scalar_select %p623, %s622, 15
        %s625 = smul.addr %s624, 8
        %s626 = scalar_lea.vmem %s5, %s625
        %s627 = smul.u32 8, %s21
        %p628 = scmp.lt.s32.totalorder %s627, 15
        %s629 = scalar_select %p628, %s627, 15
        %s630 = smul.addr %s629, 8
        %s631 = scalar_lea.vmem %s6, %s630
        // Predicated region
        $region37: #{tpu_custom_call.1} parent=35 // pred_check
          %p632 = pneg %p128
        $region38: #{tpu_custom_call.1} parent=35 // pred_check_branch
          %634 = sbr.rel (%p632) target = $region40
        $region39: #{tpu_custom_call.1} parent=35 // pred_region
          %s635 = smul.u32 8, %s21
          %s637 = ssub.s32 512, 512
          %638 = vsyncadd %s618, %s637
          %s639 = smul.addr %s635, 64
          %s640 = scalar_lea.hbm %s4, %s639
          %s641 = sshll.u32 %s621, 4
          %s642 = int_to_ptr.vmem [resolvable:$true] %s641
          %647 = dma.vmem_to_hbm [thread:$0]  %s642, 512, %s640, %s618, 64, 64, 4
        $region40: #{tpu_custom_call.1} parent=35 // pred_fallthru
          _
        // Predicated region
        $region41: #{tpu_custom_call.1} parent=35 // pred_check
          %p648 = pneg %p154
        $region42: #{tpu_custom_call.1} parent=35 // pred_check_branch
          %650 = sbr.rel (%p648) target = $region44
        $region43: #{tpu_custom_call.1} parent=35 // pred_region
          %s651 = smul.u32 8, %s21
        $region44: #{tpu_custom_call.1} parent=35 // pred_fallthru
          _
        // Predicated region
        $region45: #{tpu_custom_call.1} parent=35 // pred_check
          %p652 = pneg %p180
        $region46: #{tpu_custom_call.1} parent=35 // pred_check_branch
          %654 = sbr.rel (%p652) target = $region48
        $region47: #{tpu_custom_call.1} parent=35 // pred_region
          %s655 = smul.u32 8, %s21
        $region48: #{tpu_custom_call.1} parent=35 // pred_fallthru
          _
      $region36: #{tpu_custom_call.1} parent=5 // pred_fallthru
        _
      %p656 = scmp.le.s32.totalorder 2, %s16
      // Predicated region
      $region49: #{tpu_custom_call.1} parent=5 // pred_check
        %p657 = pneg %p656
      $region50: #{tpu_custom_call.1} parent=5 // pred_check_branch
        %659 = sbr.rel (%p657) target = $region52
      $region51: #{tpu_custom_call.1} parent=5 // pred_region
        %s660 = ssub.s32 %s16, 2
        // Predicated region
        $region53: #{tpu_custom_call.1} parent=51 // pred_check
          %p661 = pneg %p134
        $region54: #{tpu_custom_call.1} parent=51 // pred_check_branch
          %663 = sbr.rel (%p661) target = $region56
        $region55: #{tpu_custom_call.1} parent=51 // pred_region
          %s664 = sand.u32 %s119, 1
          %s665 = scalar_lea.sflag [#allocation3], %s664
          %s666 = sand.u32 %s119, 1
          %s667 = smul.addr %s666, 32
          %s668 = scalar_lea.vmem [#allocation2], %s667
          %669 = dma.done %s665, 512
        $region56: #{tpu_custom_call.1} parent=51 // pred_fallthru
          _
        // Predicated region
        $region57: #{tpu_custom_call.1} parent=51 // pred_check
          %p670 = pneg %p160
        $region58: #{tpu_custom_call.1} parent=51 // pred_check_branch
          %672 = sbr.rel (%p670) target = $region60
        $region59: #{tpu_custom_call.1} parent=51 // pred_region
          %s673 = smul.u32 8, %s22
          %p674 = scmp.lt.s32.totalorder %s673, 15
          %s675 = scalar_select %p674, %s673, 15
          %s676 = smul.addr %s675, 8
          %s677 = scalar_lea.vmem %s5, %s676
        $region60: #{tpu_custom_call.1} parent=51 // pred_fallthru
          _
        // Predicated region
        $region61: #{tpu_custom_call.1} parent=51 // pred_check
          %p678 = pneg %p186
        $region62: #{tpu_custom_call.1} parent=51 // pred_check_branch
          %680 = sbr.rel (%p678) target = $region64
        $region63: #{tpu_custom_call.1} parent=51 // pred_region
          %s681 = smul.u32 8, %s22
          %p682 = scmp.lt.s32.totalorder %s681, 15
          %s683 = scalar_select %p682, %s681, 15
          %s684 = smul.addr %s683, 8
          %s685 = scalar_lea.vmem %s6, %s684
        $region64: #{tpu_custom_call.1} parent=51 // pred_fallthru
          _
      $region52: #{tpu_custom_call.1} parent=5 // pred_fallthru
        _
    $region6: #{tpu_custom_call.1} parent=1 // loop_footer
      %s20 = sadd.s32 1, %s16
    $region7: #{tpu_custom_call.1} parent=1 // loop_footer_branch
      %15 = sbr.rel target = $region3
    $region8: #{tpu_custom_call.1} parent=1 // loop_exit
      _
    %686 = vsyncpa [#allocation3], 1
    %s687 = scalar_lea.sflag [#allocation3], 1
    %688 = vsyncpa %s687, 1

</llo_original>
